<compile_context>
chip_gen: v7x
topology: tpu7x:2x2x1
jax: 0.10.0
libtpu: 0.0.40
codegen_flags: <defaults>
</compile_context>

<pallas_src>
import numpy as np

import jax
import jax.numpy as jnp
from jax import lax
from jax.experimental import pallas as pl
from jax.experimental.pallas import tpu as pltpu


# ------------------------------ Pallas kernel -------------------------------

def _make_pose_refiner_kernel(n_layers, n_bone):
    """Fused MLP (+ReLU) + Rodrigues + in-kernel output relayout."""
    nb = n_bone

    def kernel(*refs):
        # refs: x, (w,b)*n_layers, ident, perm, out, slab(scratch)
        x_ref = refs[0]
        wb = refs[1:1 + 2 * n_layers]
        ident_ref = refs[1 + 2 * n_layers]     # (block_b, block_b) identity
        perm_ref = refs[2 + 2 * n_layers]      # (9*nb, 9*nb) 0/1 permutation
        out_ref = refs[3 + 2 * n_layers]       # (block_b, 9*nb)
        slab_ref = refs[4 + 2 * n_layers]      # VMEM scratch (9*nb, block_b)

        x = x_ref[...].astype(jnp.float32)     # natural (block_b, E) tile

        # ---------------------------- MLP ----------------------------------
        # Layer 0: NT matmul (contract both operands on their last axis); this
        # moves the batch onto the lane axis on the MXU — no explicit transpose.
        w0 = wb[0][...]
        b0 = wb[1][...].astype(jnp.float32)
        h = lax.dot_general(w0, x.astype(w0.dtype),
                            dimension_numbers=(((1,), (1,)), ((), ())),
                            preferred_element_type=jnp.float32) + b0
        if n_layers > 1:
            h = jnp.maximum(h, 0.0)
        for i in range(1, n_layers):
            w = wb[2 * i][...]
            b = wb[2 * i + 1][...].astype(jnp.float32)
            h = jnp.dot(w, h.astype(w.dtype),
                        preferred_element_type=jnp.float32) + b
            if i < n_layers - 1:
                h = jnp.maximum(h, 0.0)

        # h: (3*nb, block_b); last layer's rows were pre-permuted in the
        # wrapper to [x for all bones | y | z] -> contiguous sublane slices.
        rx = h[0 * nb:1 * nb, :]
        ry = h[1 * nb:2 * nb, :]
        rz = h[2 * nb:3 * nb, :]

        # --------------------------- Rodrigues ------------------------------
        sq = rx * rx + ry * ry + rz * rz + 1e-5
        inv_theta = lax.rsqrt(sq)              # single EUP transcendental
        theta = sq * inv_theta                 # == sqrt(sq)
        c = jnp.cos(theta)
        s = jnp.sin(theta)
        oc = 1.0 - c
        nx = rx * inv_theta
        ny = ry * inv_theta
        nz = rz * inv_theta
        sx = nx * s
        sy = ny * s
        sz = nz * s
        xy = nx * ny * oc
        xz = nx * nz * oc
        yz = ny * nz * oc

        # Store each element row directly (entry-major slab rows k*nb..k*nb+nb).
        slab_ref[0 * nb:1 * nb, :] = c + nx * nx * oc     # R00
        slab_ref[1 * nb:2 * nb, :] = xy - sz              # R01
        slab_ref[2 * nb:3 * nb, :] = xz + sy              # R02
        slab_ref[3 * nb:4 * nb, :] = xy + sz              # R10
        slab_ref[4 * nb:5 * nb, :] = c + ny * ny * oc     # R11
        slab_ref[5 * nb:6 * nb, :] = yz - sx              # R12
        slab_ref[6 * nb:7 * nb, :] = xz - sy              # R20
        slab_ref[7 * nb:8 * nb, :] = yz + sx              # R21
        slab_ref[8 * nb:9 * nb, :] = c + nz * nz * oc     # R22

        # ------------------ in-kernel output relayout -----------------------
        # (1) entry-major -> bone-major rows via a tiny NN matmul with a 0/1
        #     permutation matrix, (2) batch(lane) -> batch(sublane) transpose
        #     via an NT matmul with the identity.  Both are exact in f32 and
        #     run on the otherwise-idle MXU, so no post-kernel HBM relayout.
        bone_major = jnp.dot(perm_ref[...], slab_ref[...],
                             preferred_element_type=jnp.float32)      # (9nb, bb)
        out_t = lax.dot_general(ident_ref[...], bone_major,
                                dimension_numbers=(((1,), (1,)), ((), ())),
                                preferred_element_type=jnp.float32)   # (bb, 9nb)
        out_ref[...] = out_t.astype(out_ref.dtype)

    return kernel


# --------------------------------- wrapper -----------------------------------

def pose_refiner_forward(pose_input, weights, biases, pose_dim, total_bones,
                         *, block_b=None, matmul_dtype=jnp.float32):
    """PoseRefiner.forward.

    pose_input: (B, E), E = pose_dim * total_bones (bone-major, xyz inner).
    weights[i]: (d_in, d_out); biases[i]: (1, d_out)   (reference layout).
    Returns (B, total_bones, 3, 3).

    matmul_dtype=jnp.bfloat16 casts only the HIDDEN layers' matmul operands
    (recommended on real v5e/v6e/v7x hardware); the last layer and all
    Rodrigues math stay f32.  Default (f32) is used in the demo below.
    """
    B, E = pose_input.shape
    n_bone = total_bones
    assert pose_dim == 3 and E == pose_dim * n_bone
    n_layers = len(weights)

    # block_b: >=2 grid steps when B allows (v7x megacore sharding via the
    # "parallel" dimension semantic), capped at 256 so the Rodrigues epilogue's
    # vreg working set and the identity-transpose matmul stay small.
    # TODO(synk): strip-mine the epilogue over lane sub-chunks if block_b is
    # ever raised well beyond 512.
    if block_b is None:
        block_b = B
        if B % 128 == 0:
            for cand in (256, 128):
                if B % cand == 0 and B // cand >= 2:
                    block_b = cand
                    break
    if block_b != B:
        assert B % block_b == 0 and block_b % 8 == 0, (B, block_b)
    num_blocks = B // block_b

    # Row permutation folded into the LAST layer: bone-major xyz -> [x..|y..|z..].
    perm_rows = np.arange(E).reshape(n_bone, pose_dim).T.reshape(-1)

    operands = [pose_input]
    in_specs = [pl.BlockSpec((block_b, E), lambda i: (i, 0))]

    for li, (w, b) in enumerate(zip(weights, biases)):
        w_t = jnp.asarray(w).T                          # (out, in)
        b_t = jnp.asarray(b).reshape(-1, 1)             # (out, 1)
        if li == n_layers - 1:
            w_t = w_t[perm_rows, :]
            b_t = b_t[perm_rows, :]
        elif matmul_dtype != jnp.float32:
            w_t = w_t.astype(matmul_dtype)              # hidden layers only
        in_specs.append(pl.BlockSpec(w_t.shape, lambda i: (0, 0)))
        in_specs.append(pl.BlockSpec(b_t.shape, lambda i: (0, 0)))
        operands += [w_t, b_t]

    # Constant relayout matrices (VMEM-resident across grid steps).
    ident = jnp.eye(block_b, dtype=jnp.float32)
    permM = np.zeros((9 * n_bone, 9 * n_bone), np.float32)
    for bb in range(n_bone):
        for k in range(9):
            permM[bb * 9 + k, k * n_bone + bb] = 1.0    # out col b*9+k <- slab row k*nb+b
    operands += [ident, jnp.asarray(permM)]
    in_specs += [pl.BlockSpec((block_b, block_b), lambda i: (0, 0)),
                 pl.BlockSpec((9 * n_bone, 9 * n_bone), lambda i: (0, 0))]

    out_specs = pl.BlockSpec((block_b, 9 * n_bone), lambda i: (i, 0))

    flat = pl.pallas_call(
        _make_pose_refiner_kernel(n_layers, n_bone),
        out_shape=jax.ShapeDtypeStruct((B, 9 * n_bone), jnp.float32),
        grid=(num_blocks,),
        in_specs=in_specs,
        out_specs=out_specs,
        scratch_shapes=[pltpu.VMEM((9 * n_bone, block_b), jnp.float32)],
        compiler_params=pltpu.CompilerParams(
            dimension_semantics=("parallel",)),
    )(*operands)

    # Pure metadata reshape (row-major compatible) — no HBM relayout.
    return flat.reshape(B, n_bone, 3, 3)


# ------------------------ deterministic parameter init ----------------------

def init_pose_refiner_params(key, d_in, n_bone, d_hid, n_dims):
    E = d_in * n_bone
    dims = [E] + [d_hid] * n_dims + [E]          # n_dims + 1 Linear layers
    weights, biases = [], []
    for i in range(len(dims) - 1):
        key, kw = jax.random.split(key)
        fan_in, fan_out = dims[i], dims[i + 1]
        if i == len(dims) - 2:
            # last layer: uniform(-1e-5, 1e-5) weights, zero bias (as in __init__)
            w = jax.random.uniform(kw, (fan_in, fan_out), jnp.float32,
                                   minval=-1e-5, maxval=1e-5)
        else:
            bound = 1.0 / float(np.sqrt(fan_in))
            w = jax.random.uniform(kw, (fan_in, fan_out), jnp.float32,
                                   minval=-bound, maxval=bound)
        b = jnp.zeros((1, fan_out), jnp.float32)
        weights.append(w)
        biases.append(b)
    return weights, biases


# ------------------------------ JAX reference --------------------------------

def reference_forward(pose_input, weights, biases, pose_dim, total_bones):
    h = pose_input.astype(jnp.float32)
    n = len(weights)
    for i in range(n):
        h = h @ weights[i] + biases[i]
        if i < n - 1:
            h = jnp.maximum(h, 0.0)
    r = h.reshape(-1, pose_dim)
    # TODO(synk): epsilon placement (inside the sum of squares) copied from the
    # original RodriguesModule; small-angle outputs are only approximately orthonormal.
    theta = jnp.sqrt(1e-5 + jnp.sum(r * r, axis=1, keepdims=True))
    rn = r / theta
    c = jnp.cos(theta)
    s = jnp.sin(theta)
    rx, ry, rz = rn[:, 0:1], rn[:, 1:2], rn[:, 2:3]
    oc = 1.0 - c
    R = jnp.concatenate([
        rx * rx + (1.0 - rx * rx) * c,
        rx * ry * oc - rz * s,
        rx * rz * oc + ry * s,
        rx * ry * oc + rz * s,
        ry * ry + (1.0 - ry * ry) * c,
        ry * rz * oc - rx * s,
        rx * rz * oc - ry * s,
        ry * rz * oc + rx * s,
        rz * rz + (1.0 - rz * rz) * c,
    ], axis=1)
    return R.reshape(-1, total_bones, 3, 3)


# ---------------------------------- main -------------------------------------

if __name__ == "__main__":
    # opt: d_in=3 (axis-angle), n_bone=8, d_hid=32, n_dims=2
    d_in, n_bone, d_hid, n_dims = 3, 8, 32, 2
    E = d_in * n_bone

    key = jax.random.PRNGKey(0)
    key, kp, kx1, kx2 = jax.random.split(key, 4)
    weights, biases = init_pose_refiner_params(kp, d_in, n_bone, d_hid, n_dims)

    # Case 1: tiny batch, single grid step (B=2).
    B1 = 2
    x1 = jax.random.normal(kx1, (B1, E), jnp.float32)
    fwd = jax.jit(lambda x, ws, bs: pose_refiner_forward(x, ws, bs, d_in, n_bone))
    Rs1 = jax.block_until_ready(fwd(x1, weights, biases))
    Rs1_ref = reference_forward(x1, weights, biases, d_in, n_bone)
    assert Rs1.shape == (B1, n_bone, 3, 3), Rs1.shape
    assert jnp.allclose(Rs1, Rs1_ref, atol=1e-4, rtol=1e-4), \
        float(jnp.max(jnp.abs(Rs1 - Rs1_ref)))

    # Case 2: multi-step batch grid (B=16, block_b=8 -> 2 grid steps) to
    # exercise the tiled / "parallel" path.
    B2 = 16
    x2 = jax.random.normal(kx2, (B2, E), jnp.float32)
    fwd_tiled = jax.jit(lambda x, ws, bs: pose_refiner_forward(
        x, ws, bs, d_in, n_bone, block_b=8))
    Rs2 = jax.block_until_ready(fwd_tiled(x2, weights, biases))
    Rs2_ref = reference_forward(x2, weights, biases, d_in, n_bone)
    assert Rs2.shape == (B2, n_bone, 3, 3), Rs2.shape
    assert jnp.allclose(Rs2, Rs2_ref, atol=1e-4, rtol=1e-4), \
        float(jnp.max(jnp.abs(Rs2 - Rs2_ref)))

    print("KERNEL_OK")
</pallas_src>

<mosaic_0001>
module attributes {stable_mosaic.version = 11 : i64} {
  func.func @kernel(%arg0: i32, %arg1: memref<2x24xf32, #tpu.memory_space<vmem>>, %arg2: memref<32x24xf32, #tpu.memory_space<vmem>>, %arg3: memref<32x1xf32, #tpu.memory_space<vmem>>, %arg4: memref<32x32xf32, #tpu.memory_space<vmem>>, %arg5: memref<32x1xf32, #tpu.memory_space<vmem>>, %arg6: memref<24x32xf32, #tpu.memory_space<vmem>>, %arg7: memref<24x1xf32, #tpu.memory_space<vmem>>, %arg8: memref<2x2xf32, #tpu.memory_space<vmem>>, %arg9: memref<72x72xf32, #tpu.memory_space<vmem>>, %arg10: memref<2x72xf32, #tpu.memory_space<vmem>>, %arg11: memref<72x2xf32, #tpu.memory_space<vmem>>) attributes {dimension_semantics = [#tpu.dimension_semantics<parallel>], iteration_bounds = array<i64: 1>, scalar_prefetch = 0 : i64, scratch_operands = 1 : i64, tpu.core_type = #tpu.core_type<tc>, window_params = [{transform_indices = @transform_0, window_bounds = array<i64: 2, 24>}, {pipeline_mode = #tpu.pipeline_mode<synchronous>, transform_indices = @transform_1, window_bounds = array<i64: 32, 24>}, {pipeline_mode = #tpu.pipeline_mode<synchronous>, transform_indices = @transform_2, window_bounds = array<i64: 32, 1>}, {pipeline_mode = #tpu.pipeline_mode<synchronous>, transform_indices = @transform_3, window_bounds = array<i64: 32, 32>}, {pipeline_mode = #tpu.pipeline_mode<synchronous>, transform_indices = @transform_4, window_bounds = array<i64: 32, 1>}, {pipeline_mode = #tpu.pipeline_mode<synchronous>, transform_indices = @transform_5, window_bounds = array<i64: 24, 32>}, {pipeline_mode = #tpu.pipeline_mode<synchronous>, transform_indices = @transform_6, window_bounds = array<i64: 24, 1>}, {pipeline_mode = #tpu.pipeline_mode<synchronous>, transform_indices = @transform_7, window_bounds = array<i64: 2, 2>}, {pipeline_mode = #tpu.pipeline_mode<synchronous>, transform_indices = @transform_8, window_bounds = array<i64: 72, 72>}, {transform_indices = @transform_9, window_bounds = array<i64: 2, 72>}]} {
    %c0 = arith.constant 0 : index
    %c0_0 = arith.constant 0 : index
    %0 = vector.load %arg1[%c0, %c0_0] : memref<2x24xf32, #tpu.memory_space<vmem>>, vector<2x24xf32>
    %c0_1 = arith.constant 0 : index
    %c0_2 = arith.constant 0 : index
    %1 = vector.load %arg2[%c0_1, %c0_2] : memref<32x24xf32, #tpu.memory_space<vmem>>, vector<32x24xf32>
    %c0_3 = arith.constant 0 : index
    %c0_4 = arith.constant 0 : index
    %2 = vector.load %arg3[%c0_3, %c0_4] : memref<32x1xf32, #tpu.memory_space<vmem>>, vector<32x1xf32>
    %cst = arith.constant dense<0.000000e+00> : vector<32x2xf32>
    %3 = tpu.matmul %1, %0, %cst {dimension_numbers = #tpu.dot_dimension_numbers<[1], [1], [0], [0], [0, 0, 1, 0], [], []>} : vector<32x24xf32>, vector<2x24xf32>, vector<32x2xf32> -> vector<32x2xf32>
    %4 = vector.broadcast %2 : vector<32x1xf32> to vector<32x2xf32>
    %5 = arith.addf %3, %4 : vector<32x2xf32>
    %cst_5 = arith.constant 0.000000e+00 : f32
    %6 = vector.broadcast %cst_5 : f32 to vector<32x2xf32>
    %7 = arith.maximumf %5, %6 : vector<32x2xf32>
    %c0_6 = arith.constant 0 : index
    %c0_7 = arith.constant 0 : index
    %8 = vector.load %arg4[%c0_6, %c0_7] : memref<32x32xf32, #tpu.memory_space<vmem>>, vector<32x32xf32>
    %c0_8 = arith.constant 0 : index
    %c0_9 = arith.constant 0 : index
    %9 = vector.load %arg5[%c0_8, %c0_9] : memref<32x1xf32, #tpu.memory_space<vmem>>, vector<32x1xf32>
    %cst_10 = arith.constant dense<0.000000e+00> : vector<32x2xf32>
    %10 = tpu.matmul %8, %7, %cst_10 {dimension_numbers = #tpu.dot_dimension_numbers<[1], [0], [0], [1], [0, 0, 1, 1], [], []>} : vector<32x32xf32>, vector<32x2xf32>, vector<32x2xf32> -> vector<32x2xf32>
    %11 = vector.broadcast %9 : vector<32x1xf32> to vector<32x2xf32>
    %12 = arith.addf %10, %11 : vector<32x2xf32>
    %cst_11 = arith.constant 0.000000e+00 : f32
    %13 = vector.broadcast %cst_11 : f32 to vector<32x2xf32>
    %14 = arith.maximumf %12, %13 : vector<32x2xf32>
    %c0_12 = arith.constant 0 : index
    %c0_13 = arith.constant 0 : index
    %15 = vector.load %arg6[%c0_12, %c0_13] : memref<24x32xf32, #tpu.memory_space<vmem>>, vector<24x32xf32>
    %c0_14 = arith.constant 0 : index
    %c0_15 = arith.constant 0 : index
    %16 = vector.load %arg7[%c0_14, %c0_15] : memref<24x1xf32, #tpu.memory_space<vmem>>, vector<24x1xf32>
    %cst_16 = arith.constant dense<0.000000e+00> : vector<24x2xf32>
    %17 = tpu.matmul %15, %14, %cst_16 {dimension_numbers = #tpu.dot_dimension_numbers<[1], [0], [0], [1], [0, 0, 1, 1], [], []>} : vector<24x32xf32>, vector<32x2xf32>, vector<24x2xf32> -> vector<24x2xf32>
    %18 = vector.broadcast %16 : vector<24x1xf32> to vector<24x2xf32>
    %19 = arith.addf %17, %18 : vector<24x2xf32>
    %20 = vector.extract_strided_slice %19 {offsets = [0, 0], sizes = [8, 2], strides = [1, 1]} : vector<24x2xf32> to vector<8x2xf32>
    %21 = vector.extract_strided_slice %19 {offsets = [8, 0], sizes = [8, 2], strides = [1, 1]} : vector<24x2xf32> to vector<8x2xf32>
    %22 = vector.extract_strided_slice %19 {offsets = [16, 0], sizes = [8, 2], strides = [1, 1]} : vector<24x2xf32> to vector<8x2xf32>
    %23 = arith.mulf %20, %20 : vector<8x2xf32>
    %24 = arith.mulf %21, %21 : vector<8x2xf32>
    %25 = arith.addf %23, %24 : vector<8x2xf32>
    %26 = arith.mulf %22, %22 : vector<8x2xf32>
    %27 = arith.addf %25, %26 : vector<8x2xf32>
    %cst_17 = arith.constant 9.99999974E-6 : f32
    %28 = vector.broadcast %cst_17 : f32 to vector<8x2xf32>
    %29 = arith.addf %27, %28 : vector<8x2xf32>
    %30 = math.rsqrt %29 : vector<8x2xf32>
    %31 = arith.mulf %29, %30 : vector<8x2xf32>
    %32 = math.cos %31 : vector<8x2xf32>
    %33 = math.sin %31 : vector<8x2xf32>
    %cst_18 = arith.constant 1.000000e+00 : f32
    %34 = vector.broadcast %cst_18 : f32 to vector<8x2xf32>
    %35 = arith.subf %34, %32 : vector<8x2xf32>
    %36 = arith.mulf %20, %30 : vector<8x2xf32>
    %37 = arith.mulf %21, %30 : vector<8x2xf32>
    %38 = arith.mulf %22, %30 : vector<8x2xf32>
    %39 = arith.mulf %36, %33 : vector<8x2xf32>
    %40 = arith.mulf %37, %33 : vector<8x2xf32>
    %41 = arith.mulf %38, %33 : vector<8x2xf32>
    %42 = arith.mulf %36, %37 : vector<8x2xf32>
    %43 = arith.mulf %42, %35 : vector<8x2xf32>
    %44 = arith.mulf %36, %38 : vector<8x2xf32>
    %45 = arith.mulf %44, %35 : vector<8x2xf32>
    %46 = arith.mulf %37, %38 : vector<8x2xf32>
    %47 = arith.mulf %46, %35 : vector<8x2xf32>
    %48 = arith.mulf %36, %36 : vector<8x2xf32>
    %49 = arith.mulf %48, %35 : vector<8x2xf32>
    %50 = arith.addf %32, %49 : vector<8x2xf32>
    %c0_19 = arith.constant 0 : index
    %c0_20 = arith.constant 0 : index
    %51 = vector.load %arg11[%c0_19, %c0_20] : memref<72x2xf32, #tpu.memory_space<vmem>>, vector<8x2xf32>
    tpu.vector_store %arg11[%c0_19, %c0_20], %50 {strides = array<i32>} : memref<72x2xf32, #tpu.memory_space<vmem>>, vector<8x2xf32>,
    %52 = arith.subf %43, %41 : vector<8x2xf32>
    %c8 = arith.constant 8 : index
    %c0_21 = arith.constant 0 : index
    %53 = vector.load %arg11[%c8, %c0_21] : memref<72x2xf32, #tpu.memory_space<vmem>>, vector<8x2xf32>
    tpu.vector_store %arg11[%c8, %c0_21], %52 {strides = array<i32>} : memref<72x2xf32, #tpu.memory_space<vmem>>, vector<8x2xf32>,
    %54 = arith.addf %45, %40 : vector<8x2xf32>
    %c16 = arith.constant 16 : index
    %c0_22 = arith.constant 0 : index
    %55 = vector.load %arg11[%c16, %c0_22] : memref<72x2xf32, #tpu.memory_space<vmem>>, vector<8x2xf32>
    tpu.vector_store %arg11[%c16, %c0_22], %54 {strides = array<i32>} : memref<72x2xf32, #tpu.memory_space<vmem>>, vector<8x2xf32>,
    %56 = arith.addf %43, %41 : vector<8x2xf32>
    %c24 = arith.constant 24 : index
    %c0_23 = arith.constant 0 : index
    %57 = vector.load %arg11[%c24, %c0_23] : memref<72x2xf32, #tpu.memory_space<vmem>>, vector<8x2xf32>
    tpu.vector_store %arg11[%c24, %c0_23], %56 {strides = array<i32>} : memref<72x2xf32, #tpu.memory_space<vmem>>, vector<8x2xf32>,
    %58 = arith.mulf %37, %37 : vector<8x2xf32>
    %59 = arith.mulf %58, %35 : vector<8x2xf32>
    %60 = arith.addf %32, %59 : vector<8x2xf32>
    %c32 = arith.constant 32 : index
    %c0_24 = arith.constant 0 : index
    %61 = vector.load %arg11[%c32, %c0_24] : memref<72x2xf32, #tpu.memory_space<vmem>>, vector<8x2xf32>
    tpu.vector_store %arg11[%c32, %c0_24], %60 {strides = array<i32>} : memref<72x2xf32, #tpu.memory_space<vmem>>, vector<8x2xf32>,
    %62 = arith.subf %47, %39 : vector<8x2xf32>
    %c40 = arith.constant 40 : index
    %c0_25 = arith.constant 0 : index
    %63 = vector.load %arg11[%c40, %c0_25] : memref<72x2xf32, #tpu.memory_space<vmem>>, vector<8x2xf32>
    tpu.vector_store %arg11[%c40, %c0_25], %62 {strides = array<i32>} : memref<72x2xf32, #tpu.memory_space<vmem>>, vector<8x2xf32>,
    %64 = arith.subf %45, %40 : vector<8x2xf32>
    %c48 = arith.constant 48 : index
    %c0_26 = arith.constant 0 : index
    %65 = vector.load %arg11[%c48, %c0_26] : memref<72x2xf32, #tpu.memory_space<vmem>>, vector<8x2xf32>
    tpu.vector_store %arg11[%c48, %c0_26], %64 {strides = array<i32>} : memref<72x2xf32, #tpu.memory_space<vmem>>, vector<8x2xf32>,
    %66 = arith.addf %47, %39 : vector<8x2xf32>
    %c56 = arith.constant 56 : index
    %c0_27 = arith.constant 0 : index
    %67 = vector.load %arg11[%c56, %c0_27] : memref<72x2xf32, #tpu.memory_space<vmem>>, vector<8x2xf32>
    tpu.vector_store %arg11[%c56, %c0_27], %66 {strides = array<i32>} : memref<72x2xf32, #tpu.memory_space<vmem>>, vector<8x2xf32>,
    %68 = arith.mulf %38, %38 : vector<8x2xf32>
    %69 = arith.mulf %68, %35 : vector<8x2xf32>
    %70 = arith.addf %32, %69 : vector<8x2xf32>
    %c64 = arith.constant 64 : index
    %c0_28 = arith.constant 0 : index
    %71 = vector.load %arg11[%c64, %c0_28] : memref<72x2xf32, #tpu.memory_space<vmem>>, vector<8x2xf32>
    tpu.vector_store %arg11[%c64, %c0_28], %70 {strides = array<i32>} : memref<72x2xf32, #tpu.memory_space<vmem>>, vector<8x2xf32>,
    %c0_29 = arith.constant 0 : index
    %c0_30 = arith.constant 0 : index
    %72 = vector.load %arg9[%c0_29, %c0_30] : memref<72x72xf32, #tpu.memory_space<vmem>>, vector<72x72xf32>
    %c0_31 = arith.constant 0 : index
    %c0_32 = arith.constant 0 : index
    %73 = vector.load %arg11[%c0_31, %c0_32] : memref<72x2xf32, #tpu.memory_space<vmem>>, vector<72x2xf32>
    %cst_33 = arith.constant dense<0.000000e+00> : vector<72x2xf32>
    %74 = tpu.matmul %72, %73, %cst_33 {dimension_numbers = #tpu.dot_dimension_numbers<[1], [0], [0], [1], [0, 0, 1, 1], [], []>} : vector<72x72xf32>, vector<72x2xf32>, vector<72x2xf32> -> vector<72x2xf32>
    %c0_34 = arith.constant 0 : index
    %c0_35 = arith.constant 0 : index
    %75 = vector.load %arg8[%c0_34, %c0_35] : memref<2x2xf32, #tpu.memory_space<vmem>>, vector<2x2xf32>
    %cst_36 = arith.constant dense<0.000000e+00> : vector<2x72xf32>
    %76 = tpu.matmul %75, %74, %cst_36 {dimension_numbers = #tpu.dot_dimension_numbers<[1], [1], [0], [0], [0, 0, 1, 0], [], []>} : vector<2x2xf32>, vector<72x2xf32>, vector<2x72xf32> -> vector<2x72xf32>
    %c0_37 = arith.constant 0 : index
    %c0_38 = arith.constant 0 : index
    %77 = vector.load %arg10[%c0_37, %c0_38] : memref<2x72xf32, #tpu.memory_space<vmem>>, vector<2x72xf32>
    tpu.vector_store %arg10[%c0_37, %c0_38], %76 {strides = array<i32>} : memref<2x72xf32, #tpu.memory_space<vmem>>, vector<2x72xf32>,
    return
  }
  func.func @transform_0(%arg0: i32) -> (i32, i32) {
    %c0_i32 = arith.constant 0 : i32
    %c0_i32_0 = arith.constant 0 : i32
    return %arg0, %c0_i32 : i32, i32
  }
  func.func @transform_1(%arg0: i32) -> (i32, i32) {
    %c0_i32 = arith.constant 0 : i32
    %c0_i32_0 = arith.constant 0 : i32
    %c0_i32_1 = arith.constant 0 : i32
    return %c0_i32, %c0_i32_0 : i32, i32
  }
  func.func @transform_2(%arg0: i32) -> (i32, i32) {
    %c0_i32 = arith.constant 0 : i32
    %c0_i32_0 = arith.constant 0 : i32
    %c0_i32_1 = arith.constant 0 : i32
    return %c0_i32, %c0_i32_0 : i32, i32
  }
  func.func @transform_3(%arg0: i32) -> (i32, i32) {
    %c0_i32 = arith.constant 0 : i32
    %c0_i32_0 = arith.constant 0 : i32
    %c0_i32_1 = arith.constant 0 : i32
    return %c0_i32, %c0_i32_0 : i32, i32
  }
  func.func @transform_4(%arg0: i32) -> (i32, i32) {
    %c0_i32 = arith.constant 0 : i32
    %c0_i32_0 = arith.constant 0 : i32
    %c0_i32_1 = arith.constant 0 : i32
    return %c0_i32, %c0_i32_0 : i32, i32
  }
  func.func @transform_5(%arg0: i32) -> (i32, i32) {
    %c0_i32 = arith.constant 0 : i32
    %c0_i32_0 = arith.constant 0 : i32
    %c0_i32_1 = arith.constant 0 : i32
    return %c0_i32, %c0_i32_0 : i32, i32
  }
  func.func @transform_6(%arg0: i32) -> (i32, i32) {
    %c0_i32 = arith.constant 0 : i32
    %c0_i32_0 = arith.constant 0 : i32
    %c0_i32_1 = arith.constant 0 : i32
    return %c0_i32, %c0_i32_0 : i32, i32
  }
  func.func @transform_7(%arg0: i32) -> (i32, i32) {
    %c0_i32 = arith.constant 0 : i32
    %c0_i32_0 = arith.constant 0 : i32
    %c0_i32_1 = arith.constant 0 : i32
    return %c0_i32, %c0_i32_0 : i32, i32
  }
  func.func @transform_8(%arg0: i32) -> (i32, i32) {
    %c0_i32 = arith.constant 0 : i32
    %c0_i32_0 = arith.constant 0 : i32
    %c0_i32_1 = arith.constant 0 : i32
    return %c0_i32, %c0_i32_0 : i32, i32
  }
  func.func @transform_9(%arg0: i32) -> (i32, i32) {
    %c0_i32 = arith.constant 0 : i32
    %c0_i32_0 = arith.constant 0 : i32
    return %arg0, %c0_i32 : i32, i32
  }
}

</mosaic_0001>

<llo_original>
// kernel: _lambda_.1
$region0: #{_lambda_.1}
  #allocation0 [shape = 'u32[]', space=smem, size = 0x4, offset = 0x4, fixed_abs, tag = 'smem constant byte address 0x4 - core index']
  #allocation1 [shape = 'u32[144,128]{1,0:T(1,128)}', space=vmem, size = 0x12000, scoped, tag = 'internal scratch']
  #allocation2 [shape = 'f32[72,2]{1,0:T(8,128)}', space=vmem, size = 0x9000, scoped, tag = 'scratch operand']
  %s0 = inlined_call_operand.vmem [shape: f32[2,24], index: 0, kind: input, shape index: {}]
  %s1 = inlined_call_operand.vmem [shape: f32[32,24], index: 1, kind: input, shape index: {}]
  %s2 = inlined_call_operand.vmem [shape: f32[32,1], index: 2, kind: input, shape index: {}]
  %s3 = inlined_call_operand.vmem [shape: f32[32,32], index: 3, kind: input, shape index: {}]
  %s4 = inlined_call_operand.vmem [shape: f32[32,1], index: 4, kind: input, shape index: {}]
  %s5 = inlined_call_operand.vmem [shape: f32[24,32], index: 5, kind: input, shape index: {}]
  %s6 = inlined_call_operand.vmem [shape: f32[24,1], index: 6, kind: input, shape index: {}]
  %s7 = inlined_call_operand.vmem [shape: f32[2,2], index: 7, kind: input, shape index: {}]
  %s8 = inlined_call_operand.vmem [shape: f32[72,72], index: 8, kind: input, shape index: {}]
  %s9 = inlined_call_operand.vmem [shape: f32[2,72], index: 9, kind: output, shape index: {}]
  %s10 = sld [smem:[#allocation0]]
  $region46: #{_lambda_.1} parent=0
    _
  %s12 = ssub.s32 1, %s10
  %s13 = scalar_select 0, %s12, %s10
  // Predicated region
  $region2: #{_lambda_.1} parent=0 // pred_check
    _
  $region3: #{_lambda_.1} parent=0 // pred_check_branch
    %15 = sbr.rel (0) target = $region5
  $region4: #{_lambda_.1} parent=0 // pred_region
    _
  $region5: #{_lambda_.1} parent=0 // pred_fallthru
    _
  // Predicated region
  $region6: #{_lambda_.1} parent=0 // pred_check
    _
  $region7: #{_lambda_.1} parent=0 // pred_check_branch
    %17 = sbr.rel (0) target = $region9
  $region8: #{_lambda_.1} parent=0 // pred_region
    _
  $region9: #{_lambda_.1} parent=0 // pred_fallthru
    _
  // Predicated region
  $region10: #{_lambda_.1} parent=0 // pred_check
    _
  $region11: #{_lambda_.1} parent=0 // pred_check_branch
    %19 = sbr.rel (0) target = $region13
  $region12: #{_lambda_.1} parent=0 // pred_region
    _
  $region13: #{_lambda_.1} parent=0 // pred_fallthru
    _
  // Predicated region
  $region14: #{_lambda_.1} parent=0 // pred_check
    _
  $region15: #{_lambda_.1} parent=0 // pred_check_branch
    %21 = sbr.rel (0) target = $region17
  $region16: #{_lambda_.1} parent=0 // pred_region
    _
  $region17: #{_lambda_.1} parent=0 // pred_fallthru
    _
  // Predicated region
  $region18: #{_lambda_.1} parent=0 // pred_check
    _
  $region19: #{_lambda_.1} parent=0 // pred_check_branch
    %23 = sbr.rel (0) target = $region21
  $region20: #{_lambda_.1} parent=0 // pred_region
    _
  $region21: #{_lambda_.1} parent=0 // pred_fallthru
    _
  // Predicated region
  $region22: #{_lambda_.1} parent=0 // pred_check
    _
  $region23: #{_lambda_.1} parent=0 // pred_check_branch
    %25 = sbr.rel (0) target = $region25
  $region24: #{_lambda_.1} parent=0 // pred_region
    _
  $region25: #{_lambda_.1} parent=0 // pred_fallthru
    _
  // Predicated region
  $region26: #{_lambda_.1} parent=0 // pred_check
    _
  $region27: #{_lambda_.1} parent=0 // pred_check_branch
    %27 = sbr.rel (0) target = $region29
  $region28: #{_lambda_.1} parent=0 // pred_region
    _
  $region29: #{_lambda_.1} parent=0 // pred_fallthru
    _
  // Predicated region
  $region30: #{_lambda_.1} parent=0 // pred_check
    _
  $region31: #{_lambda_.1} parent=0 // pred_check_branch
    %29 = sbr.rel (0) target = $region33
  $region32: #{_lambda_.1} parent=0 // pred_region
    _
  $region33: #{_lambda_.1} parent=0 // pred_fallthru
    _
  // Predicated region
  $region34: #{_lambda_.1} parent=0 // pred_check
    _
  $region35: #{_lambda_.1} parent=0 // pred_check_branch
    %31 = sbr.rel (0) target = $region37
  $region36: #{_lambda_.1} parent=0 // pred_region
    _
  $region37: #{_lambda_.1} parent=0 // pred_fallthru
    _
  %v32 = vld [vmem:[%s0] sm:$0x3]
  %v33 = vld [vmem:[%s1] sm:$0xff]
  %v34 = vld [vmem:[%s1 + $0x8] sm:$0xff]
  %v35 = vld [vmem:[%s1 + $0x10] sm:$0xff]
  %v36 = vld [vmem:[%s1 + $0x18] sm:$0xff]
  %v37 = vld [vmem:[%s2] sm:$0xff]
  %v38 = vld [vmem:[%s2 + $0x8] sm:$0xff]
  %v39 = vld [vmem:[%s2 + $0x10] sm:$0xff]
  %v40 = vld [vmem:[%s2 + $0x18] sm:$0xff]
  %42 = vset.pattern.permute.xlu0 0
  %43 = vperm.xlu0 %42, %v37
  %v44 = vpop.permute.xlu0 %43
  %47 = vset.pattern.permute.xlu0 0
  %48 = vperm.xlu0 %47, %v38
  %v49 = vpop.permute.xlu0 %48
  %52 = vset.pattern.permute.xlu0 0
  %53 = vperm.xlu0 %52, %v39
  %v54 = vpop.permute.xlu0 %53
  %57 = vset.pattern.permute.xlu0 0
  %58 = vperm.xlu0 %57, %v40
  %v59 = vpop.permute.xlu0 %58
  %vm61 = vcmask 195584
  %v63 = vsel %vm61, %v33, 0
  %v66 = vsel %vm61, %v34, 0
  %v69 = vsel %vm61, %v35, 0
  %v72 = vsel %vm61, %v36, 0
  %v75 = vsel %vm61, %v32, 0
  %77 = vmatprep.subr.mxu0 0.0
  %78 = vmatpush1.xpose.msra.mxu0 %v75
  %79 = vmatprep.subr.mxu0 0.0
  %80 = vmatpush1.xpose.msra.mxu0 0.0
  %81 = vmatprep.subr.mxu0 0.0
  %82 = vmatpush1.xpose.msra.mxu0 0.0
  %83 = vmatprep.subr.mxu0 0.0
  %84 = vmatpush1.xpose.msra.mxu0 0.0
  %85 = vmatprep.subr.mxu0 0.0
  %86 = vmatpush1.xpose.msra.mxu0 0.0
  %87 = vmatprep.subr.mxu0 0.0
  %88 = vmatpush1.xpose.msra.mxu0 0.0
  %89 = vmatprep.subr.mxu0 0.0
  %90 = vmatpush1.xpose.msra.mxu0 0.0
  %91 = vmatprep.subr.mxu0 0.0
  %92 = vmatpush1.xpose.msra.mxu0 0.0
  %93 = vmatprep.subr.mxu0 0.0
  %94 = vmatpush1.xpose.msra.mxu0 0.0
  %95 = vmatprep.subr.mxu0 0.0
  %96 = vmatpush1.xpose.msra.mxu0 0.0
  %97 = vmatprep.subr.mxu0 0.0
  %98 = vmatpush1.xpose.msra.mxu0 0.0
  %99 = vmatprep.subr.mxu0 0.0
  %100 = vmatpush1.xpose.msra.mxu0 0.0
  %101 = vmatprep.subr.mxu0 0.0
  %102 = vmatpush1.xpose.msra.mxu0 0.0
  %103 = vmatprep.subr.mxu0 0.0
  %104 = vmatpush1.xpose.msra.mxu0 0.0
  %105 = vmatprep.subr.mxu0 0.0
  %106 = vmatpush1.xpose.msra.mxu0 0.0
  %107 = vmatprep.subr.mxu0 0.0
  %108 = vmatpush1.xpose.msra.mxu0 0.0
  %109 = vmatprep.subr.mxu0 0.0
  %110 = vmatpush1.xpose.msra.mxu0 0.0
  %111 = vmatprep.subr.mxu0 0.0
  %112 = vmatpush1.xpose.msra.mxu0 0.0
  %113 = vmatprep.subr.mxu0 0.0
  %114 = vmatpush1.xpose.msra.mxu0 0.0
  %115 = vmatprep.subr.mxu0 0.0
  %116 = vmatpush1.xpose.msra.mxu0 0.0
  %117 = vmatprep.subr.mxu0 0.0
  %118 = vmatpush1.xpose.msra.mxu0 0.0
  %119 = vmatprep.subr.mxu0 0.0
  %120 = vmatpush1.xpose.msra.mxu0 0.0
  %121 = vmatprep.subr.mxu0 0.0
  %122 = vmatpush1.xpose.msra.mxu0 0.0
  %123 = vmatprep.subr.mxu0 0.0
  %124 = vmatpush1.xpose.msra.mxu0 0.0
  %125 = vmatprep.subr.mxu0 0.0
  %126 = vmatpush1.xpose.msra.mxu0 0.0
  %127 = vmatprep.subr.mxu0 0.0
  %128 = vmatpush1.xpose.msra.mxu0 0.0
  %129 = vmatprep.subr.mxu0 0.0
  %130 = vmatpush1.xpose.msra.mxu0 0.0
  %131 = vmatprep.subr.mxu0 0.0
  %132 = vmatpush1.xpose.msra.mxu0 0.0
  %133 = vmatprep.subr.mxu0 0.0
  %134 = vmatpush1.xpose.msra.mxu0 0.0
  %135 = vmatprep.subr.mxu0 0.0
  %136 = vmatpush1.xpose.msra.mxu0 0.0
  %137 = vmatprep.subr.mxu0 0.0
  %138 = vmatpush1.xpose.msra.mxu0 0.0
  %139 = vmatprep.subr.mxu0 0.0
  %140 = vmatpush1.xpose.msra.mxu0 0.0
  %141 = vmatprep.mubr.f32.mxu0 0.0
  %142 = vmatmul.mubr.f32.gmra.mrb[0].mxu0 %v63
  %v143 = vpop.f32.mrb[0].mxu0
  %v144 = vadd.f32 %v44, %v143
  %v145 = vpop.f32.mrb[0].mxu0
  %146 = vmatprep.mubr.f32.mxu0 0.0
  %147 = vmatmul.mubr.f32.gmra.mrb[0].mxu0 %v66
  %v148 = vpop.f32.mrb[0].mxu0
  %v149 = vadd.f32 %v49, %v148
  %v150 = vpop.f32.mrb[0].mxu0
  %151 = vmatprep.mubr.f32.mxu0 0.0
  %152 = vmatmul.mubr.f32.gmra.mrb[0].mxu0 %v69
  %v153 = vpop.f32.mrb[0].mxu0
  %v154 = vadd.f32 %v54, %v153
  %v155 = vpop.f32.mrb[0].mxu0
  %156 = vmatprep.mubr.f32.mxu0 0.0
  %157 = vmatmul.mubr.f32.gmra.mrb[0].mxu0 %v72
  %v158 = vpop.f32.mrb[0].mxu0
  %v159 = vadd.f32 %v59, %v158
  %v160 = vpop.f32.mrb[0].mxu0
  %161 = vdwg.mxu0
  %v162 = vmax.f32 %v144, 0.0
  %v163 = vmax.f32 %v149, 0.0
  %v164 = vmax.f32 %v154, 0.0
  %v165 = vmax.f32 %v159, 0.0
  %v166 = vld [vmem:[%s3] sm:$0xff]
  %v167 = vld [vmem:[%s3 + $0x8] sm:$0xff]
  %v168 = vld [vmem:[%s3 + $0x10] sm:$0xff]
  %v169 = vld [vmem:[%s3 + $0x18] sm:$0xff]
  %v170 = vld [vmem:[%s4] sm:$0xff]
  %v171 = vld [vmem:[%s4 + $0x8] sm:$0xff]
  %v172 = vld [vmem:[%s4 + $0x10] sm:$0xff]
  %v173 = vld [vmem:[%s4 + $0x18] sm:$0xff]
  %175 = vset.pattern.permute.xlu0 0
  %176 = vperm.xlu0 %175, %v170
  %v177 = vpop.permute.xlu0 %176
  %180 = vset.pattern.permute.xlu0 0
  %181 = vperm.xlu0 %180, %v171
  %v182 = vpop.permute.xlu0 %181
  %185 = vset.pattern.permute.xlu0 0
  %186 = vperm.xlu0 %185, %v172
  %v187 = vpop.permute.xlu0 %186
  %190 = vset.pattern.permute.xlu0 0
  %191 = vperm.xlu0 %190, %v173
  %v192 = vpop.permute.xlu0 %191
  %vm194 = vcmask 261120
  %v196 = vsel %vm194, %v166, 0
  %v199 = vsel %vm194, %v167, 0
  %v202 = vsel %vm194, %v168, 0
  %v205 = vsel %vm194, %v169, 0
  %207 = vmatprep.subr.mxu0 0.0
  %208 = vmatpush1.msra.mxu0 %v162
  %209 = vmatprep.subr.mxu0 0.0
  %210 = vmatpush1.msra.mxu0 %v163
  %211 = vmatprep.subr.mxu0 0.0
  %212 = vmatpush1.msra.mxu0 %v164
  %213 = vmatprep.subr.mxu0 0.0
  %214 = vmatpush1.msra.mxu0 %v165
  %215 = vmatprep.subr.mxu0 0.0
  %216 = vmatpush1.msra.mxu0 0.0
  %217 = vmatprep.subr.mxu0 0.0
  %218 = vmatpush1.msra.mxu0 0.0
  %219 = vmatprep.subr.mxu0 0.0
  %220 = vmatpush1.msra.mxu0 0.0
  %221 = vmatprep.subr.mxu0 0.0
  %222 = vmatpush1.msra.mxu0 0.0
  %223 = vmatprep.subr.mxu0 0.0
  %224 = vmatpush1.msra.mxu0 0.0
  %225 = vmatprep.subr.mxu0 0.0
  %226 = vmatpush1.msra.mxu0 0.0
  %227 = vmatprep.subr.mxu0 0.0
  %228 = vmatpush1.msra.mxu0 0.0
  %229 = vmatprep.subr.mxu0 0.0
  %230 = vmatpush1.msra.mxu0 0.0
  %231 = vmatprep.subr.mxu0 0.0
  %232 = vmatpush1.msra.mxu0 0.0
  %233 = vmatprep.subr.mxu0 0.0
  %234 = vmatpush1.msra.mxu0 0.0
  %235 = vmatprep.subr.mxu0 0.0
  %236 = vmatpush1.msra.mxu0 0.0
  %237 = vmatprep.subr.mxu0 0.0
  %238 = vmatpush1.msra.mxu0 0.0
  %239 = vmatprep.subr.mxu0 0.0
  %240 = vmatpush1.msra.mxu0 0.0
  %241 = vmatprep.subr.mxu0 0.0
  %242 = vmatpush1.msra.mxu0 0.0
  %243 = vmatprep.subr.mxu0 0.0
  %244 = vmatpush1.msra.mxu0 0.0
  %245 = vmatprep.subr.mxu0 0.0
  %246 = vmatpush1.msra.mxu0 0.0
  %247 = vmatprep.subr.mxu0 0.0
  %248 = vmatpush1.msra.mxu0 0.0
  %249 = vmatprep.subr.mxu0 0.0
  %250 = vmatpush1.msra.mxu0 0.0
  %251 = vmatprep.subr.mxu0 0.0
  %252 = vmatpush1.msra.mxu0 0.0
  %253 = vmatprep.subr.mxu0 0.0
  %254 = vmatpush1.msra.mxu0 0.0
  %255 = vmatprep.subr.mxu0 0.0
  %256 = vmatpush1.msra.mxu0 0.0
  %257 = vmatprep.subr.mxu0 0.0
  %258 = vmatpush1.msra.mxu0 0.0
  %259 = vmatprep.subr.mxu0 0.0
  %260 = vmatpush1.msra.mxu0 0.0
  %261 = vmatprep.subr.mxu0 0.0
  %262 = vmatpush1.msra.mxu0 0.0
  %263 = vmatprep.subr.mxu0 0.0
  %264 = vmatpush1.msra.mxu0 0.0
  %265 = vmatprep.subr.mxu0 0.0
  %266 = vmatpush1.msra.mxu0 0.0
  %267 = vmatprep.subr.mxu0 0.0
  %268 = vmatpush1.msra.mxu0 0.0
  %269 = vmatprep.subr.mxu0 0.0
  %270 = vmatpush1.msra.mxu0 0.0
  %271 = vmatprep.mubr.f32.mxu0 0.0
  %272 = vmatmul.mubr.f32.gmra.mrb[0].mxu0 %v196
  %v273 = vpop.f32.mrb[0].mxu0
  %v274 = vadd.f32 %v177, %v273
  %v275 = vpop.f32.mrb[0].mxu0
  %276 = vmatprep.mubr.f32.mxu0 0.0
  %277 = vmatmul.mubr.f32.gmra.mrb[0].mxu0 %v199
  %v278 = vpop.f32.mrb[0].mxu0
  %v279 = vadd.f32 %v182, %v278
  %v280 = vpop.f32.mrb[0].mxu0
  %281 = vmatprep.mubr.f32.mxu0 0.0
  %282 = vmatmul.mubr.f32.gmra.mrb[0].mxu0 %v202
  %v283 = vpop.f32.mrb[0].mxu0
  %v284 = vadd.f32 %v187, %v283
  %v285 = vpop.f32.mrb[0].mxu0
  %286 = vmatprep.mubr.f32.mxu0 0.0
  %287 = vmatmul.mubr.f32.gmra.mrb[0].mxu0 %v205
  %v288 = vpop.f32.mrb[0].mxu0
  %v289 = vadd.f32 %v192, %v288
  %v290 = vpop.f32.mrb[0].mxu0
  %291 = vdwg.mxu0
  %v292 = vmax.f32 %v274, 0.0
  %v293 = vmax.f32 %v279, 0.0
  %v294 = vmax.f32 %v284, 0.0
  %v295 = vmax.f32 %v289, 0.0
  %v296 = vld [vmem:[%s5] sm:$0xff]
  %v297 = vld [vmem:[%s5 + $0x8] sm:$0xff]
  %v298 = vld [vmem:[%s5 + $0x10] sm:$0xff]
  %v299 = vld [vmem:[%s6] sm:$0xff]
  %v300 = vld [vmem:[%s6 + $0x8] sm:$0xff]
  %v301 = vld [vmem:[%s6 + $0x10] sm:$0xff]
  %303 = vset.pattern.permute.xlu0 0
  %304 = vperm.xlu0 %303, %v299
  %v305 = vpop.permute.xlu0 %304
  %308 = vset.pattern.permute.xlu0 0
  %309 = vperm.xlu0 %308, %v300
  %v310 = vpop.permute.xlu0 %309
  %313 = vset.pattern.permute.xlu0 0
  %314 = vperm.xlu0 %313, %v301
  %v315 = vpop.permute.xlu0 %314
  %v318 = vsel %vm194, %v296, 0
  %v321 = vsel %vm194, %v297, 0
  %v324 = vsel %vm194, %v298, 0
  %326 = vmatprep.subr.mxu0 0.0
  %327 = vmatpush1.msra.mxu0 %v292
  %328 = vmatprep.subr.mxu0 0.0
  %329 = vmatpush1.msra.mxu0 %v293
  %330 = vmatprep.subr.mxu0 0.0
  %331 = vmatpush1.msra.mxu0 %v294
  %332 = vmatprep.subr.mxu0 0.0
  %333 = vmatpush1.msra.mxu0 %v295
  %334 = vmatprep.subr.mxu0 0.0
  %335 = vmatpush1.msra.mxu0 0.0
  %336 = vmatprep.subr.mxu0 0.0
  %337 = vmatpush1.msra.mxu0 0.0
  %338 = vmatprep.subr.mxu0 0.0
  %339 = vmatpush1.msra.mxu0 0.0
  %340 = vmatprep.subr.mxu0 0.0
  %341 = vmatpush1.msra.mxu0 0.0
  %342 = vmatprep.subr.mxu0 0.0
  %343 = vmatpush1.msra.mxu0 0.0
  %344 = vmatprep.subr.mxu0 0.0
  %345 = vmatpush1.msra.mxu0 0.0
  %346 = vmatprep.subr.mxu0 0.0
  %347 = vmatpush1.msra.mxu0 0.0
  %348 = vmatprep.subr.mxu0 0.0
  %349 = vmatpush1.msra.mxu0 0.0
  %350 = vmatprep.subr.mxu0 0.0
  %351 = vmatpush1.msra.mxu0 0.0
  %352 = vmatprep.subr.mxu0 0.0
  %353 = vmatpush1.msra.mxu0 0.0
  %354 = vmatprep.subr.mxu0 0.0
  %355 = vmatpush1.msra.mxu0 0.0
  %356 = vmatprep.subr.mxu0 0.0
  %357 = vmatpush1.msra.mxu0 0.0
  %358 = vmatprep.subr.mxu0 0.0
  %359 = vmatpush1.msra.mxu0 0.0
  %360 = vmatprep.subr.mxu0 0.0
  %361 = vmatpush1.msra.mxu0 0.0
  %362 = vmatprep.subr.mxu0 0.0
  %363 = vmatpush1.msra.mxu0 0.0
  %364 = vmatprep.subr.mxu0 0.0
  %365 = vmatpush1.msra.mxu0 0.0
  %366 = vmatprep.subr.mxu0 0.0
  %367 = vmatpush1.msra.mxu0 0.0
  %368 = vmatprep.subr.mxu0 0.0
  %369 = vmatpush1.msra.mxu0 0.0
  %370 = vmatprep.subr.mxu0 0.0
  %371 = vmatpush1.msra.mxu0 0.0
  %372 = vmatprep.subr.mxu0 0.0
  %373 = vmatpush1.msra.mxu0 0.0
  %374 = vmatprep.subr.mxu0 0.0
  %375 = vmatpush1.msra.mxu0 0.0
  %376 = vmatprep.subr.mxu0 0.0
  %377 = vmatpush1.msra.mxu0 0.0
  %378 = vmatprep.subr.mxu0 0.0
  %379 = vmatpush1.msra.mxu0 0.0
  %380 = vmatprep.subr.mxu0 0.0
  %381 = vmatpush1.msra.mxu0 0.0
  %382 = vmatprep.subr.mxu0 0.0
  %383 = vmatpush1.msra.mxu0 0.0
  %384 = vmatprep.subr.mxu0 0.0
  %385 = vmatpush1.msra.mxu0 0.0
  %386 = vmatprep.subr.mxu0 0.0
  %387 = vmatpush1.msra.mxu0 0.0
  %388 = vmatprep.subr.mxu0 0.0
  %389 = vmatpush1.msra.mxu0 0.0
  %390 = vmatprep.mubr.f32.mxu0 0.0
  %391 = vmatmul.mubr.f32.gmra.mrb[0].mxu0 %v318
  %v392 = vpop.f32.mrb[0].mxu0
  %v393 = vadd.f32 %v305, %v392
  %v394 = vpop.f32.mrb[0].mxu0
  %395 = vmatprep.mubr.f32.mxu0 0.0
  %396 = vmatmul.mubr.f32.gmra.mrb[0].mxu0 %v321
  %v397 = vpop.f32.mrb[0].mxu0
  %v398 = vadd.f32 %v310, %v397
  %v399 = vpop.f32.mrb[0].mxu0
  %400 = vmatprep.mubr.f32.mxu0 0.0
  %401 = vmatmul.mubr.f32.gmra.mrb[0].mxu0 %v324
  %v402 = vpop.f32.mrb[0].mxu0
  %v403 = vadd.f32 %v315, %v402
  %v404 = vpop.f32.mrb[0].mxu0
  %405 = vdwg.mxu0
  %v406 = vmul.f32 %v393, %v393
  %v407 = vmul.f32 %v398, %v398
  %v408 = vadd.f32 %v406, %v407
  %v409 = vmul.f32 %v403, %v403
  %v410 = vadd.f32 %v408, %v409
  %v411 = vadd.f32 %v410, 1e-05
  %v412 = vrsqrt.pop %v411
  %v413 = vmul.f32 %v411, %v412
  %v414 = vand.u32 2147483647, %v413
  %vm415 = vcmp.le.f32.partialorder %v414, 0.7853982
  %vm416 = vcmp.lt.s32.totalorder %v413, 0
  %v417 = vand.u32 %v413, 2139095040
  %v418 = vshrl.u32 %v417, 23
  %v419 = vsub.s32 %v418, 127
  %v420 = vand.u32 2147483647, %v413
  %v421 = vand.u32 %v420, 8388607
  %v422 = vor.u32 %v421, 8388608
  %v423 = vsub.s32 0, %v422
  %v424 = vadd.s32 %v419, 1
  %vm425 = vcmp.gt.s32.totalorder %v424, 0
  %v426 = vsel %vm425, %v424, 0
  %v427 = vshrl.u32 %v426, 5
  %v428 = vand.u32 %v426, 31
  %v429 = vsub.s32 32, %v428
  %v430 = vshrl.u32 683565275, %v429
  %v431 = vshll.u32 683565275, %v428
  %v432 = vshrl.u32 2475754826, %v429
  %v433 = vor.u32 %v431, %v432
  %v434 = vshll.u32 2475754826, %v428
  %v435 = vshrl.u32 2131351028, %v429
  %v436 = vor.u32 %v434, %v435
  %v437 = vshll.u32 2131351028, %v428
  %v438 = vshrl.u32 2102212464, %v429
  %v439 = vor.u32 %v437, %v438
  %v440 = vshll.u32 2102212464, %v428
  %v441 = vshrl.u32 920167782, %v429
  %v442 = vor.u32 %v440, %v441
  %v443 = vshll.u32 920167782, %v428
  %v444 = vshrl.u32 1326507024, %v429
  %v445 = vor.u32 %v443, %v444
  %vm446 = vcmp.lt.s32.totalorder %v427, 1
  %vm447 = vcmp.lt.s32.totalorder %v427, 2
  %vm448 = vcmp.lt.s32.totalorder %v427, 3
  %vm449 = vcmp.lt.s32.totalorder %v427, 4
  %v450 = vsel %vm446, %v430, %v433
  %v451 = vsel %vm449, %v439, 2102212464
  %v452 = vsel %vm448, %v436, %v451
  %v453 = vsel %vm447, %v450, %v452
  %v454 = vsel %vm446, %v433, %v436
  %v455 = vsel %vm449, %v442, 920167782
  %v456 = vsel %vm448, %v439, %v455
  %v457 = vsel %vm447, %v454, %v456
  %v458 = vsel %vm446, %v436, %v439
  %v459 = vsel %vm449, %v445, 1326507024
  %v460 = vsel %vm448, %v442, %v459
  %v461 = vsel %vm447, %v458, %v460
  %v462 = vshll.u32 %v422, 8
  %v463 = vmul.u32.u64.compose %v462, %v461
  %v464 = vextract.low.u32 %v463
  %v465 = vextract.high.u32 %v463
  %v466 = vmul.u32.u64.compose %v462, %v457
  %v467 = vextract.low.u32 %v466
  %v468 = vextract.high.u32 %v466
  %v469 = vmul.u32 %v462, %v453
  %v470 = vadd.s32 %v465, %v467
  %vm471 = vc.u32 %v465, %v467
  %v472 = vadd.s32 %v468, 1
  %v473 = vsel %vm471, %v472, %v468
  %v474 = vadd.s32 %v469, %v473
  %v475 = vadd.s32 %v474, 536870912
  %v476 = vshrl.u32 %v475, 30
  %v477 = vshll.u32 %v476, 30
  %v478 = vsub.s32 %v474, %v477
  %vm479 = vcmp.lt.s32.totalorder %v478, 0
  %v480 = vsub.s32 0, %v478
  %v481 = vsel %vm479, %v480, %v478
  %v482 = vclz %v481
  %v483 = vsub.s32 %v482, 2
  %vm484 = vcmp.gt.s32.totalorder 0, %v483
  %v485 = vsel %vm484, 0, %v483
  %v486 = vsub.s32 32, %v485
  %v487 = vshll.u32 %v478, %v485
  %v488 = vshrl.u32 %v470, %v486
  %v489 = vor.u32 %v487, %v488
  %v490 = vsub.s32 4294967266, %v485
  %v491 = vadd.s32 %v490, 127
  %v492 = vshll.u32 %v491, 23
  %v493 = vor.u32 4788187, %v492
  %v494 = vand.u32 2147483647, %v493
  %v496 = vcvt.s32.f32 %v489
  %v497 = vmul.f32 %v496, %v494
  %v498 = vxor.u32 %v497, 2147483648
  %v499 = vsel %vm416, %v498, %v497
  %v500 = vsub.s32 4, %v476
  %v501 = vsel %vm416, %v500, %v476
  %v502 = vsel %vm415, %v413, %v499
  %v503 = vsel %vm415, 0, %v501
  %v504 = vcosq.f32.pop %v502
  %v505 = vsinq.f32.pop %v502
  %vm506 = vweird.f32 %v413
  %v507 = vand.u32 %v503, 3
  %vm508 = vcmp.lt.s32.totalorder %v507, 2
  %vm509 = vcmp.eq.s32.totalorder %v507, 0
  %v510 = vxor.u32 %v505, 2147483648
  %v511 = vsel %vm509, %v504, %v510
  %vm512 = vcmp.eq.s32.totalorder %v507, 2
  %v513 = vxor.u32 %v504, 2147483648
  %v514 = vsel %vm512, %v513, %v505
  %v515 = vsel %vm508, %v511, %v514
  %v516 = vsel %vm506, nan, %v515
  %v517 = vand.u32 2147483647, %v413
  %vm518 = vcmp.le.f32.partialorder %v517, 0.7853982
  %vm519 = vcmp.lt.s32.totalorder %v413, 0
  %v520 = vand.u32 %v413, 2139095040
  %v521 = vshrl.u32 %v520, 23
  %v522 = vsub.s32 %v521, 127
  %v523 = vand.u32 2147483647, %v413
  %v524 = vand.u32 %v523, 8388607
  %v525 = vor.u32 %v524, 8388608
  %v526 = vsub.s32 0, %v525
  %v527 = vadd.s32 %v522, 1
  %vm528 = vcmp.gt.s32.totalorder %v527, 0
  %v529 = vsel %vm528, %v527, 0
  %v530 = vshrl.u32 %v529, 5
  %v531 = vand.u32 %v529, 31
  %v532 = vsub.s32 32, %v531
  %v533 = vshrl.u32 683565275, %v532
  %v534 = vshll.u32 683565275, %v531
  %v535 = vshrl.u32 2475754826, %v532
  %v536 = vor.u32 %v534, %v535
  %v537 = vshll.u32 2475754826, %v531
  %v538 = vshrl.u32 2131351028, %v532
  %v539 = vor.u32 %v537, %v538
  %v540 = vshll.u32 2131351028, %v531
  %v541 = vshrl.u32 2102212464, %v532
  %v542 = vor.u32 %v540, %v541
  %v543 = vshll.u32 2102212464, %v531
  %v544 = vshrl.u32 920167782, %v532
  %v545 = vor.u32 %v543, %v544
  %v546 = vshll.u32 920167782, %v531
  %v547 = vshrl.u32 1326507024, %v532
  %v548 = vor.u32 %v546, %v547
  %vm549 = vcmp.lt.s32.totalorder %v530, 1
  %vm550 = vcmp.lt.s32.totalorder %v530, 2
  %vm551 = vcmp.lt.s32.totalorder %v530, 3
  %vm552 = vcmp.lt.s32.totalorder %v530, 4
  %v553 = vsel %vm549, %v533, %v536
  %v554 = vsel %vm552, %v542, 2102212464
  %v555 = vsel %vm551, %v539, %v554
  %v556 = vsel %vm550, %v553, %v555
  %v557 = vsel %vm549, %v536, %v539
  %v558 = vsel %vm552, %v545, 920167782
  %v559 = vsel %vm551, %v542, %v558
  %v560 = vsel %vm550, %v557, %v559
  %v561 = vsel %vm549, %v539, %v542
  %v562 = vsel %vm552, %v548, 1326507024
  %v563 = vsel %vm551, %v545, %v562
  %v564 = vsel %vm550, %v561, %v563
  %v565 = vshll.u32 %v525, 8
  %v566 = vmul.u32.u64.compose %v565, %v564
  %v567 = vextract.low.u32 %v566
  %v568 = vextract.high.u32 %v566
  %v569 = vmul.u32.u64.compose %v565, %v560
  %v570 = vextract.low.u32 %v569
  %v571 = vextract.high.u32 %v569
  %v572 = vmul.u32 %v565, %v556
  %v573 = vadd.s32 %v568, %v570
  %vm574 = vc.u32 %v568, %v570
  %v575 = vadd.s32 %v571, 1
  %v576 = vsel %vm574, %v575, %v571
  %v577 = vadd.s32 %v572, %v576
  %v578 = vadd.s32 %v577, 536870912
  %v579 = vshrl.u32 %v578, 30
  %v580 = vshll.u32 %v579, 30
  %v581 = vsub.s32 %v577, %v580
  %vm582 = vcmp.lt.s32.totalorder %v581, 0
  %v583 = vsub.s32 0, %v581
  %v584 = vsel %vm582, %v583, %v581
  %v585 = vclz %v584
  %v586 = vsub.s32 %v585, 2
  %vm587 = vcmp.gt.s32.totalorder 0, %v586
  %v588 = vsel %vm587, 0, %v586
  %v589 = vsub.s32 32, %v588
  %v590 = vshll.u32 %v581, %v588
  %v591 = vshrl.u32 %v573, %v589
  %v592 = vor.u32 %v590, %v591
  %v593 = vsub.s32 4294967266, %v588
  %v594 = vadd.s32 %v593, 127
  %v595 = vshll.u32 %v594, 23
  %v596 = vor.u32 4788187, %v595
  %v597 = vand.u32 2147483647, %v596
  %v599 = vcvt.s32.f32 %v592
  %v600 = vmul.f32 %v599, %v597
  %v601 = vxor.u32 %v600, 2147483648
  %v602 = vsel %vm519, %v601, %v600
  %v603 = vsub.s32 4, %v579
  %v604 = vsel %vm519, %v603, %v579
  %v605 = vsel %vm518, %v413, %v602
  %v606 = vsel %vm518, 0, %v604
  %v607 = vcosq.f32.pop %v605
  %v608 = vsinq.f32.pop %v605
  %vm609 = vweird.f32 %v413
  %v610 = vadd.s32 %v606, 3
  %v611 = vand.u32 %v610, 3
  %vm612 = vcmp.lt.s32.totalorder %v611, 2
  %vm613 = vcmp.eq.s32.totalorder %v611, 0
  %v614 = vxor.u32 %v608, 2147483648
  %v615 = vsel %vm613, %v607, %v614
  %vm616 = vcmp.eq.s32.totalorder %v611, 2
  %v617 = vxor.u32 %v607, 2147483648
  %v618 = vsel %vm616, %v617, %v608
  %v619 = vsel %vm612, %v615, %v618
  %v620 = vsel %vm609, nan, %v619
  %v621 = vsub.f32 1.0, %v516
  %v622 = vmul.f32 %v393, %v412
  %v623 = vmul.f32 %v398, %v412
  %v624 = vmul.f32 %v403, %v412
  %v625 = vmul.f32 %v622, %v620
  %v626 = vmul.f32 %v623, %v620
  %v627 = vmul.f32 %v624, %v620
  %v628 = vmul.f32 %v622, %v623
  %v629 = vmul.f32 %v628, %v621
  %v630 = vmul.f32 %v622, %v624
  %v631 = vmul.f32 %v630, %v621
  %v632 = vmul.f32 %v623, %v624
  %v633 = vmul.f32 %v632, %v621
  %v634 = vmul.f32 %v622, %v622
  %v635 = vmul.f32 %v634, %v621
  %v636 = vadd.f32 %v516, %v635
  %vm637 = vcmask 15360
  %638 = vst.msk [vmem:[#allocation2] sm:$0xff] %vm637, %v636
  %v639 = vsub.f32 %v629, %v627
  %640 = vst.msk [vmem:[#allocation2 + $0x8] sm:$0xff] %vm637, %v639
  %v641 = vadd.f32 %v631, %v626
  %642 = vst.msk [vmem:[#allocation2 + $0x10] sm:$0xff] %vm637, %v641
  %v643 = vadd.f32 %v629, %v627
  %644 = vst.msk [vmem:[#allocation2 + $0x18] sm:$0xff] %vm637, %v643
  %v645 = vmul.f32 %v623, %v623
  %v646 = vmul.f32 %v645, %v621
  %v647 = vadd.f32 %v516, %v646
  %648 = vst.msk [vmem:[#allocation2 + $0x20] sm:$0xff] %vm637, %v647
  %v649 = vsub.f32 %v633, %v625
  %650 = vst.msk [vmem:[#allocation2 + $0x28] sm:$0xff] %vm637, %v649
  %v651 = vsub.f32 %v631, %v626
  %652 = vst.msk [vmem:[#allocation2 + $0x30] sm:$0xff] %vm637, %v651
  %v653 = vadd.f32 %v633, %v625
  %654 = vst.msk [vmem:[#allocation2 + $0x38] sm:$0xff] %vm637, %v653
  %v655 = vmul.f32 %v624, %v624
  %v656 = vmul.f32 %v655, %v621
  %v657 = vadd.f32 %v516, %v656
  %658 = vst.msk [vmem:[#allocation2 + $0x40] sm:$0xff] %vm637, %v657
  %v659 = vld [vmem:[%s8] sm:$0xff]
  %v660 = vld [vmem:[%s8 + $0x8] sm:$0xff]
  %v661 = vld [vmem:[%s8 + $0x10] sm:$0xff]
  %v662 = vld [vmem:[%s8 + $0x18] sm:$0xff]
  %v663 = vld [vmem:[%s8 + $0x20] sm:$0xff]
  %v664 = vld [vmem:[%s8 + $0x28] sm:$0xff]
  %v665 = vld [vmem:[%s8 + $0x30] sm:$0xff]
  %v666 = vld [vmem:[%s8 + $0x38] sm:$0xff]
  %v667 = vld [vmem:[%s8 + $0x40] sm:$0xff]
  %v668 = vld [vmem:[#allocation2] sm:$0xff]
  %v669 = vld [vmem:[#allocation2 + $0x8] sm:$0xff]
  %v670 = vld [vmem:[#allocation2 + $0x10] sm:$0xff]
  %v671 = vld [vmem:[#allocation2 + $0x18] sm:$0xff]
  %v672 = vld [vmem:[#allocation2 + $0x20] sm:$0xff]
  %v673 = vld [vmem:[#allocation2 + $0x28] sm:$0xff]
  %v674 = vld [vmem:[#allocation2 + $0x30] sm:$0xff]
  %v675 = vld [vmem:[#allocation2 + $0x38] sm:$0xff]
  %v676 = vld [vmem:[#allocation2 + $0x40] sm:$0xff]
  %vm677 = vcmask 588800
  %v679 = vsel %vm677, %v659, 0
  %v682 = vsel %vm677, %v660, 0
  %v685 = vsel %vm677, %v661, 0
  %v688 = vsel %vm677, %v662, 0
  %v691 = vsel %vm677, %v663, 0
  %v694 = vsel %vm677, %v664, 0
  %v697 = vsel %vm677, %v665, 0
  %v700 = vsel %vm677, %v666, 0
  %v703 = vsel %vm677, %v667, 0
  %705 = vmatprep.subr.mxu0 0.0
  %706 = vmatpush1.msra.mxu0 %v668
  %707 = vmatprep.subr.mxu0 0.0
  %708 = vmatpush1.msra.mxu0 %v669
  %709 = vmatprep.subr.mxu0 0.0
  %710 = vmatpush1.msra.mxu0 %v670
  %711 = vmatprep.subr.mxu0 0.0
  %712 = vmatpush1.msra.mxu0 %v671
  %713 = vmatprep.subr.mxu0 0.0
  %714 = vmatpush1.msra.mxu0 %v672
  %715 = vmatprep.subr.mxu0 0.0
  %716 = vmatpush1.msra.mxu0 %v673
  %717 = vmatprep.subr.mxu0 0.0
  %718 = vmatpush1.msra.mxu0 %v674
  %719 = vmatprep.subr.mxu0 0.0
  %720 = vmatpush1.msra.mxu0 %v675
  %721 = vmatprep.subr.mxu0 0.0
  %722 = vmatpush1.msra.mxu0 %v676
  %723 = vmatprep.subr.mxu0 0.0
  %724 = vmatpush1.msra.mxu0 0.0
  %725 = vmatprep.subr.mxu0 0.0
  %726 = vmatpush1.msra.mxu0 0.0
  %727 = vmatprep.subr.mxu0 0.0
  %728 = vmatpush1.msra.mxu0 0.0
  %729 = vmatprep.subr.mxu0 0.0
  %730 = vmatpush1.msra.mxu0 0.0
  %731 = vmatprep.subr.mxu0 0.0
  %732 = vmatpush1.msra.mxu0 0.0
  %733 = vmatprep.subr.mxu0 0.0
  %734 = vmatpush1.msra.mxu0 0.0
  %735 = vmatprep.subr.mxu0 0.0
  %736 = vmatpush1.msra.mxu0 0.0
  %737 = vmatprep.subr.mxu0 0.0
  %738 = vmatpush1.msra.mxu0 0.0
  %739 = vmatprep.subr.mxu0 0.0
  %740 = vmatpush1.msra.mxu0 0.0
  %741 = vmatprep.subr.mxu0 0.0
  %742 = vmatpush1.msra.mxu0 0.0
  %743 = vmatprep.subr.mxu0 0.0
  %744 = vmatpush1.msra.mxu0 0.0
  %745 = vmatprep.subr.mxu0 0.0
  %746 = vmatpush1.msra.mxu0 0.0
  %747 = vmatprep.subr.mxu0 0.0
  %748 = vmatpush1.msra.mxu0 0.0
  %749 = vmatprep.subr.mxu0 0.0
  %750 = vmatpush1.msra.mxu0 0.0
  %751 = vmatprep.subr.mxu0 0.0
  %752 = vmatpush1.msra.mxu0 0.0
  %753 = vmatprep.subr.mxu0 0.0
  %754 = vmatpush1.msra.mxu0 0.0
  %755 = vmatprep.subr.mxu0 0.0
  %756 = vmatpush1.msra.mxu0 0.0
  %757 = vmatprep.subr.mxu0 0.0
  %758 = vmatpush1.msra.mxu0 0.0
  %759 = vmatprep.subr.mxu0 0.0
  %760 = vmatpush1.msra.mxu0 0.0
  %761 = vmatprep.subr.mxu0 0.0
  %762 = vmatpush1.msra.mxu0 0.0
  %763 = vmatprep.subr.mxu0 0.0
  %764 = vmatpush1.msra.mxu0 0.0
  %765 = vmatprep.subr.mxu0 0.0
  %766 = vmatpush1.msra.mxu0 0.0
  %767 = vmatprep.subr.mxu0 0.0
  %768 = vmatpush1.msra.mxu0 0.0
  %769 = vmatprep.mubr.f32.mxu0 0.0
  %770 = vmatmul.mubr.f32.gmra.mrb[0].mxu0 %v679
  %v771 = vpop.f32.mrb[0].mxu0
  %v772 = vadd.f32 0.0, %v771
  %v773 = vpop.f32.mrb[0].mxu0
  %774 = vmatprep.mubr.f32.mxu0 0.0
  %775 = vmatmul.mubr.f32.gmra.mrb[0].mxu0 %v682
  %v776 = vpop.f32.mrb[0].mxu0
  %v777 = vadd.f32 0.0, %v776
  %v778 = vpop.f32.mrb[0].mxu0
  %779 = vmatprep.mubr.f32.mxu0 0.0
  %780 = vmatmul.mubr.f32.gmra.mrb[0].mxu0 %v685
  %v781 = vpop.f32.mrb[0].mxu0
  %v782 = vadd.f32 0.0, %v781
  %v783 = vpop.f32.mrb[0].mxu0
  %784 = vmatprep.mubr.f32.mxu0 0.0
  %785 = vmatmul.mubr.f32.gmra.mrb[0].mxu0 %v688
  %v786 = vpop.f32.mrb[0].mxu0
  %v787 = vadd.f32 0.0, %v786
  %v788 = vpop.f32.mrb[0].mxu0
  %789 = vmatprep.mubr.f32.mxu0 0.0
  %790 = vmatmul.mubr.f32.gmra.mrb[0].mxu0 %v691
  %v791 = vpop.f32.mrb[0].mxu0
  %v792 = vadd.f32 0.0, %v791
  %v793 = vpop.f32.mrb[0].mxu0
  %794 = vmatprep.mubr.f32.mxu0 0.0
  %795 = vmatmul.mubr.f32.gmra.mrb[0].mxu0 %v694
  %v796 = vpop.f32.mrb[0].mxu0
  %v797 = vadd.f32 0.0, %v796
  %v798 = vpop.f32.mrb[0].mxu0
  %799 = vmatprep.mubr.f32.mxu0 0.0
  %800 = vmatmul.mubr.f32.gmra.mrb[0].mxu0 %v697
  %v801 = vpop.f32.mrb[0].mxu0
  %v802 = vadd.f32 0.0, %v801
  %v803 = vpop.f32.mrb[0].mxu0
  %804 = vmatprep.mubr.f32.mxu0 0.0
  %805 = vmatmul.mubr.f32.gmra.mrb[0].mxu0 %v700
  %v806 = vpop.f32.mrb[0].mxu0
  %v807 = vadd.f32 0.0, %v806
  %v808 = vpop.f32.mrb[0].mxu0
  %809 = vmatprep.mubr.f32.mxu0 0.0
  %810 = vmatmul.mubr.f32.gmra.mrb[0].mxu0 %v703
  %v811 = vpop.f32.mrb[0].mxu0
  %v812 = vadd.f32 0.0, %v811
  %v813 = vpop.f32.mrb[0].mxu0
  %814 = vdwg.mxu0
  %v815 = vld [vmem:[%s7] sm:$0x3]
  %v817 = vsel %vm637, %v815, 0
  %v820 = vsel %vm637, %v772, 0
  %v823 = vsel %vm637, %v777, 0
  %v826 = vsel %vm637, %v782, 0
  %v829 = vsel %vm637, %v787, 0
  %v832 = vsel %vm637, %v792, 0
  %v835 = vsel %vm637, %v797, 0
  %v838 = vsel %vm637, %v802, 0
  %v841 = vsel %vm637, %v807, 0
  %v844 = vsel %vm637, %v812, 0
  %846 = vmatprep.subr.mxu0 0.0
  %847 = vmatpush1.xpose.msra.mxu0 %v820
  %848 = vmatprep.subr.mxu0 0.0
  %849 = vmatpush1.xpose.msra.mxu0 %v823
  %850 = vmatprep.subr.mxu0 0.0
  %851 = vmatpush1.xpose.msra.mxu0 %v826
  %852 = vmatprep.subr.mxu0 0.0
  %853 = vmatpush1.xpose.msra.mxu0 %v829
  %854 = vmatprep.subr.mxu0 0.0
  %855 = vmatpush1.xpose.msra.mxu0 %v832
  %856 = vmatprep.subr.mxu0 0.0
  %857 = vmatpush1.xpose.msra.mxu0 %v835
  %858 = vmatprep.subr.mxu0 0.0
  %859 = vmatpush1.xpose.msra.mxu0 %v838
  %860 = vmatprep.subr.mxu0 0.0
  %861 = vmatpush1.xpose.msra.mxu0 %v841
  %862 = vmatprep.subr.mxu0 0.0
  %863 = vmatpush1.xpose.msra.mxu0 %v844
  %864 = vmatprep.subr.mxu0 0.0
  %865 = vmatpush1.xpose.msra.mxu0 0.0
  %866 = vmatprep.subr.mxu0 0.0
  %867 = vmatpush1.xpose.msra.mxu0 0.0
  %868 = vmatprep.subr.mxu0 0.0
  %869 = vmatpush1.xpose.msra.mxu0 0.0
  %870 = vmatprep.subr.mxu0 0.0
  %871 = vmatpush1.xpose.msra.mxu0 0.0
  %872 = vmatprep.subr.mxu0 0.0
  %873 = vmatpush1.xpose.msra.mxu0 0.0
  %874 = vmatprep.subr.mxu0 0.0
  %875 = vmatpush1.xpose.msra.mxu0 0.0
  %876 = vmatprep.subr.mxu0 0.0
  %877 = vmatpush1.xpose.msra.mxu0 0.0
  %878 = vmatprep.subr.mxu0 0.0
  %879 = vmatpush1.xpose.msra.mxu0 0.0
  %880 = vmatprep.subr.mxu0 0.0
  %881 = vmatpush1.xpose.msra.mxu0 0.0
  %882 = vmatprep.subr.mxu0 0.0
  %883 = vmatpush1.xpose.msra.mxu0 0.0
  %884 = vmatprep.subr.mxu0 0.0
  %885 = vmatpush1.xpose.msra.mxu0 0.0
  %886 = vmatprep.subr.mxu0 0.0
  %887 = vmatpush1.xpose.msra.mxu0 0.0
  %888 = vmatprep.subr.mxu0 0.0
  %889 = vmatpush1.xpose.msra.mxu0 0.0
  %890 = vmatprep.subr.mxu0 0.0
  %891 = vmatpush1.xpose.msra.mxu0 0.0
  %892 = vmatprep.subr.mxu0 0.0
  %893 = vmatpush1.xpose.msra.mxu0 0.0
  %894 = vmatprep.subr.mxu0 0.0
  %895 = vmatpush1.xpose.msra.mxu0 0.0
  %896 = vmatprep.subr.mxu0 0.0
  %897 = vmatpush1.xpose.msra.mxu0 0.0
  %898 = vmatprep.subr.mxu0 0.0
  %899 = vmatpush1.xpose.msra.mxu0 0.0
  %900 = vmatprep.subr.mxu0 0.0
  %901 = vmatpush1.xpose.msra.mxu0 0.0
  %902 = vmatprep.subr.mxu0 0.0
  %903 = vmatpush1.xpose.msra.mxu0 0.0
  %904 = vmatprep.subr.mxu0 0.0
  %905 = vmatpush1.xpose.msra.mxu0 0.0
  %906 = vmatprep.subr.mxu0 0.0
  %907 = vmatpush1.xpose.msra.mxu0 0.0
  %908 = vmatprep.subr.mxu0 0.0
  %909 = vmatpush1.xpose.msra.mxu0 0.0
  %910 = vmatprep.mubr.f32.mxu0 0.0
  %911 = vmatmul.mubr.f32.gmra.mrb[0].mxu0 %v817
  %v912 = vpop.f32.mrb[0].mxu0
  %v913 = vadd.f32 0.0, %v912
  %v914 = vpop.f32.mrb[0].mxu0
  %915 = vdwg.mxu0
  %vm916 = vcmask 582656
  %917 = vst.msk [vmem:[%s9] sm:$0x3] %vm916, %v913
  // Predicated region
  $region38: #{_lambda_.1} parent=0 // pred_check
    _
  $region39: #{_lambda_.1} parent=0 // pred_check_branch
    %919 = sbr.rel (0) target = $region41
  $region40: #{_lambda_.1} parent=0 // pred_region
    _
  $region41: #{_lambda_.1} parent=0 // pred_fallthru
    _
  // Predicated region
  $region42: #{_lambda_.1} parent=0 // pred_check
    _
  $region43: #{_lambda_.1} parent=0 // pred_check_branch
    %921 = sbr.rel (0) target = $region45
  $region44: #{_lambda_.1} parent=0 // pred_region
    _
  $region45: #{_lambda_.1} parent=0 // pred_fallthru
    _

</llo_original>
